<compile_context>
chip_gen: v7x
topology: tpu7x:2x2x1
jax: 0.10.0
libtpu: 0.0.40
codegen_flags: <defaults>
</compile_context>

<pallas_src>
import functools
import math

import jax
import jax.numpy as jnp
from jax.experimental import pallas as pl
from jax.experimental.pallas import tpu as pltpu

# Weight K/N are pre-padded to these multiples at load time so the default large
# tiles always divide the padded dims (typical LLM dims are already multiples).
_K_ALIGN = 512
_N_ALIGN = 512


def _round_up(a: int, b: int) -> int:
    return ((a + b - 1) // b) * b


def _binary_diff_kernel(coeff_ref,                  # scalar prefetch (SMEM), shape (1,) f32
                        x_ref, base_ref, sign_ref,  # VMEM tiles: bf16, bf16, int8
                        o_ref,                      # VMEM output tile (out_dtype)
                        acc_ref):                   # VMEM f32 accumulator scratch
    k = pl.program_id(2)

    @pl.when(k == 0)
    def _():
        acc_ref[...] = jnp.zeros_like(acc_ref)

    # Fuse the effective weight in bf16 on the VPU (v6e/v7x bf16 VALU path):
    #   w = base + coeff * sign    with sign in {-1, +1} (exact in bf16/int8).
    c = coeff_ref[0].astype(base_ref.dtype)                      # bf16 scalar, once
    w = base_ref[...] + c * sign_ref[...].astype(base_ref.dtype)

    # Single MXU matmul per tile, f32 accumulation in scratch.
    acc_ref[...] += jnp.dot(x_ref[...], w, preferred_element_type=jnp.float32)

    @pl.when(k == pl.num_programs(2) - 1)
    def _():
        o_ref[...] = acc_ref[...].astype(o_ref.dtype)


@functools.partial(jax.jit,
                   static_argnames=("out_features", "tm", "tn", "tk", "out_dtype"))
def binary_diff_forward(x, base_t, sign_t, coeff, *, out_features,
                        tm=512, tn=512, tk=1024, out_dtype=jnp.float32):
    """x: (B, S, K); base_t: (Kp, Np) bf16; sign_t: (Kp, Np) int8; coeff: (1,) f32.

    base_t / sign_t must come from make_binary_diff_params (pre-transposed, pre-padded).
    Returns (B, S, out_features) in out_dtype.
    """
    B, S, K = x.shape
    Kp, Np = base_t.shape
    assert sign_t.shape == (Kp, Np)
    assert Kp % 128 == 0 and Np % 128 == 0, "weights must be pre-padded (use make_binary_diff_params)"
    assert K <= Kp and out_features <= Np

    M = B * S
    wdtype = base_t.dtype
    x2d = x.reshape(M, K).astype(wdtype)

    # --- tile selection -------------------------------------------------------
    # M: one block for decode / small batch so weights are fetched & fused once.
    tm = _round_up(min(tm, M), 16)           # 16 = bf16 sublane packing
    Mp = _round_up(M, tm)

    # N / K: tiles must evenly divide the pre-padded weight dims.
    tn = Np if Np <= tn else max(math.gcd(Np, _round_up(tn, 128)), 128)
    tk = Kp if Kp <= tk else max(math.gcd(Kp, _round_up(tk, 128)), 128)

    # v7x megacore: if decode leaves only one M block and one N block, split N so
    # both TensorCores get a parallel block.
    if Mp // tm == 1 and Np // tn == 1 and Np >= 256 and Np % 256 == 0:
        tn = Np // 2

    # Per-call padding only for x (weights were padded once at load time).
    if (Mp, Kp) != (M, K):
        x2d = jnp.pad(x2d, ((0, Mp - M), (0, Kp - K)))

    grid = (Mp // tm, Np // tn, Kp // tk)

    cost = pl.CostEstimate(
        flops=2 * Mp * Np * Kp,
        transcendentals=0,
        bytes_accessed=(Mp * Kp * 2                       # x (bf16)
                        + Kp * Np * 2 + Kp * Np * 1       # base (bf16) + sign (int8)
                        + Mp * Np * jnp.dtype(out_dtype).itemsize),
    )

    out2d = pl.pallas_call(
        _binary_diff_kernel,
        out_shape=jax.ShapeDtypeStruct((Mp, Np), out_dtype),
        grid_spec=pltpu.PrefetchScalarGridSpec(
            num_scalar_prefetch=1,                                  # coeff -> SMEM
            grid=grid,
            in_specs=[
                pl.BlockSpec((tm, tk), lambda i, j, k, c: (i, k)),  # x
                pl.BlockSpec((tk, tn), lambda i, j, k, c: (k, j)),  # base^T (bf16)
                pl.BlockSpec((tk, tn), lambda i, j, k, c: (k, j)),  # sign^T (int8)
            ],
            out_specs=pl.BlockSpec((tm, tn), lambda i, j, k, c: (i, j)),
            scratch_shapes=[pltpu.VMEM((tm, tn), jnp.float32)],     # f32 accumulator
        ),
        compiler_params=pltpu.CompilerParams(
            dimension_semantics=("parallel", "parallel", "arbitrary"),
            vmem_limit_bytes=48 * 1024 * 1024),
        cost_estimate=cost,
    )(coeff, x2d, base_t, sign_t)

    return out2d[:M, :out_features].reshape(B, S, out_features)


def make_binary_diff_params(base, finetune, wdtype=jnp.bfloat16):
    """Mirrors BinaryDiff.__init__ (dense int8 sign instead of bit-packed mask).

    Does transpose, dtype casts and K/N zero-padding ONCE at load time.
    Returns (base_t, sign_t, coeff, out_features).
    """
    diff = (finetune - base).astype(jnp.float32)
    coeff = jnp.mean(jnp.abs(diff)).reshape(1).astype(jnp.float32)   # 'quantile'
    # mask[diff < 0] = 0 in the original => sign = +1 where diff >= 0 (incl. zero), -1 else.
    sign = jnp.where(diff < 0, jnp.int8(-1), jnp.int8(1))

    base_t = base.T.astype(wdtype)        # (in, out) = (K, N)
    sign_t = sign.T                       # (K, N) int8
    K, N = base_t.shape
    Kp, Np = _round_up(K, _K_ALIGN), _round_up(N, _N_ALIGN)
    if (Kp, Np) != (K, N):                # zero padding: padded rows/cols contribute 0
        base_t = jnp.pad(base_t, ((0, Kp - K), (0, Np - N)))
        sign_t = jnp.pad(sign_t, ((0, Kp - K), (0, Np - N)))
    return base_t, sign_t, coeff, N


if __name__ == "__main__":
    # Small, deliberately ragged shapes to exercise padding / tile-clamping paths.
    B, S = 2, 7                 # batch, sequence -> M = 14
    IN, OUT = 200, 320          # in_features (K), out_features (N)

    key = jax.random.PRNGKey(0)
    k_base, k_ft, k_x = jax.random.split(key, 3)

    base = jax.random.normal(k_base, (OUT, IN), dtype=jnp.float32)        # (out, in)
    finetune = base + 0.02 * jax.random.normal(k_ft, (OUT, IN), dtype=jnp.float32)
    x = jax.random.normal(k_x, (B, S, IN), dtype=jnp.float32)

    base_t, sign_t, coeff, out_features = make_binary_diff_params(base, finetune)

    out = binary_diff_forward(x, base_t, sign_t, coeff, out_features=out_features)
    out = jax.block_until_ready(out)
    assert out.shape == (B, S, OUT)

    # Pure-JAX f32 reference of the PyTorch forward: x @ base.T + coeff * (x @ sign.T)
    sign_f32 = jnp.where((finetune - base) < 0, -1.0, 1.0)
    ref = (jnp.einsum("bsk,ok->bso", x, base)
           + coeff[0] * jnp.einsum("bsk,ok->bso", x, sign_f32))

    # Weights/activations are bf16-quantized in the kernel -> relative max-error check.
    rel_err = jnp.max(jnp.abs(out - ref)) / (jnp.max(jnp.abs(ref)) + 1e-6)
    assert rel_err < 1e-2, f"relative error too large: {rel_err}"

    print("KERNEL_OK")
</pallas_src>

<mosaic_0001>
module attributes {stable_mosaic.version = 11 : i64} {
  func.func @_binary_diff_kernel(%arg0: i32, %arg1: i32, %arg2: i32, %arg3: memref<1xf32, #tpu.memory_space<smem>>, %arg4: memref<16x512xbf16, #tpu.memory_space<vmem>>, %arg5: memref<512x256xbf16, #tpu.memory_space<vmem>>, %arg6: memref<512x256xi8, #tpu.memory_space<vmem>>, %arg7: memref<16x256xf32, #tpu.memory_space<vmem>>, %arg8: memref<16x256xf32, #tpu.memory_space<vmem>>) attributes {dimension_semantics = [#tpu.dimension_semantics<parallel>, #tpu.dimension_semantics<parallel>, #tpu.dimension_semantics<arbitrary>], iteration_bounds = array<i64: 1, 2, 1>, scalar_prefetch = 1 : i64, scratch_operands = 1 : i64, tpu.core_type = #tpu.core_type<tc>, window_params = [{transform_indices = @transform_0, window_bounds = array<i64: 16, 512>}, {transform_indices = @transform_1, window_bounds = array<i64: 512, 256>}, {transform_indices = @transform_2, window_bounds = array<i64: 512, 256>}, {transform_indices = @transform_3, window_bounds = array<i64: 16, 256>}]} {
    %c0_i32 = arith.constant 0 : i32
    %0 = arith.cmpi eq, %arg2, %c0_i32 : i32
    %1 = arith.extui %0 : i1 to i32
    %c0_i32_0 = arith.constant 0 : i32
    %2 = arith.cmpi ne, %1, %c0_i32_0 : i32
    scf.if %2 {
      %cst_13 = arith.constant 0.000000e+00 : f32
      %19 = vector.broadcast %cst_13 : f32 to vector<16x256xf32>
      %c0_14 = arith.constant 0 : index
      %c0_15 = arith.constant 0 : index
      %20 = vector.load %arg8[%c0_14, %c0_15] : memref<16x256xf32, #tpu.memory_space<vmem>>, vector<16x256xf32>
      tpu.vector_store %arg8[%c0_14, %c0_15], %19 {strides = array<i32>} : memref<16x256xf32, #tpu.memory_space<vmem>>, vector<16x256xf32>,
    } else {
    }
    %c0 = arith.constant 0 : index
    %3 = memref.load %arg3[%c0] : memref<1xf32, #tpu.memory_space<smem>>
    %4 = arith.truncf %3 : f32 to bf16
    %c0_1 = arith.constant 0 : index
    %c0_2 = arith.constant 0 : index
    %5 = vector.load %arg5[%c0_1, %c0_2] : memref<512x256xbf16, #tpu.memory_space<vmem>>, vector<512x256xbf16>
    %c0_3 = arith.constant 0 : index
    %c0_4 = arith.constant 0 : index
    %6 = vector.load %arg6[%c0_3, %c0_4] : memref<512x256xi8, #tpu.memory_space<vmem>>, vector<512x256xi8>
    %7 = arith.sitofp %6 : vector<512x256xi8> to vector<512x256xbf16>
    %8 = vector.broadcast %4 : bf16 to vector<512x256xbf16>
    %9 = arith.mulf %8, %7 : vector<512x256xbf16>
    %10 = arith.addf %5, %9 : vector<512x256xbf16>
    %c0_5 = arith.constant 0 : index
    %c0_6 = arith.constant 0 : index
    %11 = vector.load %arg8[%c0_5, %c0_6] : memref<16x256xf32, #tpu.memory_space<vmem>>, vector<16x256xf32>
    %c0_7 = arith.constant 0 : index
    %c0_8 = arith.constant 0 : index
    %12 = vector.load %arg4[%c0_7, %c0_8] : memref<16x512xbf16, #tpu.memory_space<vmem>>, vector<16x512xbf16>
    %cst = arith.constant dense<0.000000e+00> : vector<16x256xf32>
    %13 = tpu.matmul %12, %10, %cst {dimension_numbers = #tpu.dot_dimension_numbers<[1], [0], [0], [1], [0, 0, 1, 1], [], []>} : vector<16x512xbf16>, vector<512x256xbf16>, vector<16x256xf32> -> vector<16x256xf32>
    %14 = arith.addf %11, %13 : vector<16x256xf32>
    %c0_9 = arith.constant 0 : index
    %c0_10 = arith.constant 0 : index
    %15 = vector.load %arg8[%c0_9, %c0_10] : memref<16x256xf32, #tpu.memory_space<vmem>>, vector<16x256xf32>
    tpu.vector_store %arg8[%c0_9, %c0_10], %14 {strides = array<i32>} : memref<16x256xf32, #tpu.memory_space<vmem>>, vector<16x256xf32>,
    %c0_i32_11 = arith.constant 0 : i32
    %16 = arith.cmpi eq, %arg2, %c0_i32_11 : i32
    %17 = arith.extui %16 : i1 to i32
    %c0_i32_12 = arith.constant 0 : i32
    %18 = arith.cmpi ne, %17, %c0_i32_12 : i32
    scf.if %18 {
      %c0_13 = arith.constant 0 : index
      %c0_14 = arith.constant 0 : index
      %19 = vector.load %arg8[%c0_13, %c0_14] : memref<16x256xf32, #tpu.memory_space<vmem>>, vector<16x256xf32>
      %c0_15 = arith.constant 0 : index
      %c0_16 = arith.constant 0 : index
      %20 = vector.load %arg7[%c0_15, %c0_16] : memref<16x256xf32, #tpu.memory_space<vmem>>, vector<16x256xf32>
      tpu.vector_store %arg7[%c0_15, %c0_16], %19 {strides = array<i32>} : memref<16x256xf32, #tpu.memory_space<vmem>>, vector<16x256xf32>,
    } else {
    }
    return
  }
  func.func @transform_0(%arg0: i32, %arg1: i32, %arg2: i32, %arg3: memref<1xf32, #tpu.memory_space<smem>>) -> (i32, i32) {
    %c0_i32 = arith.constant 0 : i32
    return %arg0, %arg2 : i32, i32
  }
  func.func @transform_1(%arg0: i32, %arg1: i32, %arg2: i32, %arg3: memref<1xf32, #tpu.memory_space<smem>>) -> (i32, i32) {
    %c0_i32 = arith.constant 0 : i32
    return %arg2, %arg1 : i32, i32
  }
  func.func @transform_2(%arg0: i32, %arg1: i32, %arg2: i32, %arg3: memref<1xf32, #tpu.memory_space<smem>>) -> (i32, i32) {
    %c0_i32 = arith.constant 0 : i32
    return %arg2, %arg1 : i32, i32
  }
  func.func @transform_3(%arg0: i32, %arg1: i32, %arg2: i32, %arg3: memref<1xf32, #tpu.memory_space<smem>>) -> (i32, i32) {
    %c0_i32 = arith.constant 0 : i32
    return %arg0, %arg1 : i32, i32
  }
}

</mosaic_0001>

<llo_original>
// kernel: binary_diff_forward.1
$region0: #{binary_diff_forward.1}
  #allocation0 [shape = 'u32[]', space=smem, size = 0x4, offset = 0x4, fixed_abs, tag = 'smem constant byte address 0x4 - core index']
  #allocation1 [shape = 'u32[144,128]{1,0:T(1,128)}', space=vmem, size = 0x12000, scoped, tag = 'internal scratch']
  #allocation2 [shape = 'f32[16,256]{1,0:T(8,128)}', space=vmem, size = 0x4000, scoped, tag = 'scratch operand']
  #allocation3 [shape = 's32[1]{0}', space=sflag, size = 0x4, scoped, tag = 'scoped memory for binary_diff_forward.1']
  #allocation4 [shape = 'f32[1]{0:T(128)S(6)}', space=smem, size = 0x200, scoped, tag = 'prefetched SMEM operand 0']
  %s0 = inlined_call_operand.<no memory space> [shape: f32[1], index: 0, kind: input, shape index: {}]
  %s1 = inlined_call_operand.vmem [shape: bf16[16,512], index: 1, kind: input, shape index: {}]
  %s2 = inlined_call_operand.hbm [shape: bf16[512,512], index: 2, kind: input, shape index: {}]
  %s3 = inlined_call_operand.hbm [shape: s8[512,512], index: 3, kind: input, shape index: {}]
  %s4 = inlined_call_operand.vmem [shape: f32[16,512], index: 4, kind: output, shape index: {}]
  %s5 = sld [smem:[#allocation0]]
  $region80: #{binary_diff_forward.1} parent=0
    _
  %s7 = ssub.s32 1, %s5
  %s8 = scalar_select 0, %s7, %s5
  %9 = sst [smem:[#allocation4]] %s0
  $region1: #{binary_diff_forward.1} parent=0
    #allocation5 [shape = 'u8[524288]{0}', space=vmem, size = 0x80000, scoped, tag = 'input window, operand 2']
    #allocation6 [shape = 's32[2]{0}', space=sflag, size = 0x8, scoped, tag = 'scoped memory for binary_diff_forward.1']
    #allocation7 [shape = 'u8[262144]{0}', space=vmem, size = 0x40000, scoped, tag = 'input window, operand 3']
    #allocation8 [shape = 's32[2]{0}', space=sflag, size = 0x8, scoped, tag = 'scoped memory for binary_diff_forward.1']
    #allocation9 [shape = 'u8[32768]{0}', space=vmem, size = 0x8000, scoped, tag = 'output window, operand 0']
    %10 = vsyncpa [#allocation6], 0
    %s11 = scalar_lea.sflag [#allocation6], 1
    %12 = vsyncpa %s11, 0
    %13 = vsyncpa [#allocation8], 0
    %s14 = scalar_lea.sflag [#allocation8], 1
    %15 = vsyncpa %s14, 0
    loop: start=0, step=1, limit=4
    $region2: #{binary_diff_forward.1} parent=1 // loop_pre_header
      _
    $region3: #{binary_diff_forward.1} parent=1 // loop_header
      %s17 = sphi 0, %s21
      %p18 = scmp.ge.s32.totalorder %s17, 4
      %s24 = sphi 0, %s43
      %s25 = sphi 0, %s39
      %s26 = sphi 0, %s35
      %s27 = sphi 0, %s24
      %s28 = sphi 0, %s25
      %s29 = sphi 0, %s26
      %s30 = sphi 0, %s27
      %s31 = sphi 0, %s28
      %s32 = sphi 0, %s29
      %s48 = sphi 0, %s50
      %s51 = sphi 0, %s48
      %s52 = sphi 0, %s51
      %s68 = sphi 0, %s52
      %s76 = sphi 0, %s78
      %s79 = sphi 0, %s76
      %s80 = sphi 0, %s79
      %s96 = sphi 0, %s80
      %s104 = sphi 0, %s106
      %s107 = sphi 0, %s104
      %s108 = sphi 0, %s107
      %s124 = sphi 0, %s108
      %s132 = sphi 0, %s134
      %s135 = sphi 0, %s132
      %s136 = sphi 0, %s135
      %s152 = sphi 0, %s136
    $region4: #{binary_diff_forward.1} parent=1 // loop_header_branch
      %20 = sbr.rel (%p18) target = $region8
    $region5: #{binary_diff_forward.1} parent=1 // loop_body
      %s22 = ssub.s32 %s17, 1
      %s23 = ssub.s32 %s17, 2
      %s33 = sadd.s32 1, %s26
      %p34 = scmp.ge.s32.totalorder %s33, 1
      %s35 = scalar_select %p34, 0, %s33
      %s36 = sadd.s32 1, %s25
      %s37 = scalar_select %p34, %s36, %s25
      %p38 = scmp.ge.s32.totalorder %s37, 2
      %s39 = scalar_select %p38, 0, %s37
      %s40 = sadd.s32 1, %s24
      %s41 = scalar_select %p38, %s40, %s24
      %p42 = scmp.ge.s32.totalorder %s41, 1
      %s43 = scalar_select %p42, 0, %s41
      %s44 = ssub.s32 %s24, %s43
      %s45 = ssub.s32 %s26, %s35
      %s46 = sor.u32 %s44, %s45
      %p47 = scmp.eq.s32.totalorder %s46, 0
      %s49 = sadd.s32 %s48, 1
      %s50 = scalar_select %p47, %s48, %s49
      %p53 = pneg %p47
      %p54 = scmp.eq.s32.totalorder %s17, 1
      %p55 = por %p53, %p54
      %p56 = scmp.ne.s32.totalorder %s48, %s51
      %p57 = scmp.eq.s32.totalorder %s17, 0
      %p58 = por %p56, %p57
      %p59 = scmp.ne.s32.totalorder %s48, %s51
      %p60 = scmp.eq.s32.totalorder %s22, 1
      %p61 = por %p59, %p60
      %p62 = scmp.ne.s32.totalorder %s51, %s52
      %p63 = scmp.eq.s32.totalorder %s22, 0
      %p64 = por %p62, %p63
      %p65 = scmp.ne.s32.totalorder %s51, %s52
      %p66 = scmp.eq.s32.totalorder %s23, 1
      %p67 = por %p65, %p66
      %p69 = scmp.ne.s32.totalorder %s52, %s68
      %p70 = scmp.eq.s32.totalorder %s23, 0
      %p71 = por %p69, %p70
      %s72 = ssub.s32 %s26, %s35
      %s73 = ssub.s32 %s25, %s39
      %s74 = sor.u32 %s72, %s73
      %p75 = scmp.eq.s32.totalorder %s74, 0
      %s77 = sadd.s32 %s76, 1
      %s78 = scalar_select %p75, %s76, %s77
      %p81 = pneg %p75
      %p82 = scmp.eq.s32.totalorder %s17, 1
      %p83 = por %p81, %p82
      %p84 = scmp.ne.s32.totalorder %s76, %s79
      %p85 = scmp.eq.s32.totalorder %s17, 0
      %p86 = por %p84, %p85
      %p87 = scmp.ne.s32.totalorder %s76, %s79
      %p88 = scmp.eq.s32.totalorder %s22, 1
      %p89 = por %p87, %p88
      %p90 = scmp.ne.s32.totalorder %s79, %s80
      %p91 = scmp.eq.s32.totalorder %s22, 0
      %p92 = por %p90, %p91
      %p93 = scmp.ne.s32.totalorder %s79, %s80
      %p94 = scmp.eq.s32.totalorder %s23, 1
      %p95 = por %p93, %p94
      %p97 = scmp.ne.s32.totalorder %s80, %s96
      %p98 = scmp.eq.s32.totalorder %s23, 0
      %p99 = por %p97, %p98
      %s100 = ssub.s32 %s26, %s35
      %s101 = ssub.s32 %s25, %s39
      %s102 = sor.u32 %s100, %s101
      %p103 = scmp.eq.s32.totalorder %s102, 0
      %s105 = sadd.s32 %s104, 1
      %s106 = scalar_select %p103, %s104, %s105
      %p109 = pneg %p103
      %p110 = scmp.eq.s32.totalorder %s17, 1
      %p111 = por %p109, %p110
      %p112 = scmp.ne.s32.totalorder %s104, %s107
      %p113 = scmp.eq.s32.totalorder %s17, 0
      %p114 = por %p112, %p113
      %p115 = scmp.ne.s32.totalorder %s104, %s107
      %p116 = scmp.eq.s32.totalorder %s22, 1
      %p117 = por %p115, %p116
      %p118 = scmp.ne.s32.totalorder %s107, %s108
      %p119 = scmp.eq.s32.totalorder %s22, 0
      %p120 = por %p118, %p119
      %p121 = scmp.ne.s32.totalorder %s107, %s108
      %p122 = scmp.eq.s32.totalorder %s23, 1
      %p123 = por %p121, %p122
      %p125 = scmp.ne.s32.totalorder %s108, %s124
      %p126 = scmp.eq.s32.totalorder %s23, 0
      %p127 = por %p125, %p126
      %s128 = ssub.s32 %s24, %s43
      %s129 = ssub.s32 %s25, %s39
      %s130 = sor.u32 %s128, %s129
      %p131 = scmp.eq.s32.totalorder %s130, 0
      %s133 = sadd.s32 %s132, 1
      %s134 = scalar_select %p131, %s132, %s133
      %p137 = pneg %p131
      %p138 = scmp.eq.s32.totalorder %s17, 1
      %p139 = por %p137, %p138
      %p140 = scmp.ne.s32.totalorder %s132, %s135
      %p141 = scmp.eq.s32.totalorder %s17, 0
      %p142 = por %p140, %p141
      %p143 = scmp.ne.s32.totalorder %s132, %s135
      %p144 = scmp.eq.s32.totalorder %s22, 1
      %p145 = por %p143, %p144
      %p146 = scmp.ne.s32.totalorder %s135, %s136
      %p147 = scmp.eq.s32.totalorder %s22, 0
      %p148 = por %p146, %p147
      %p149 = scmp.ne.s32.totalorder %s135, %s136
      %p150 = scmp.eq.s32.totalorder %s23, 1
      %p151 = por %p149, %p150
      %p153 = scmp.ne.s32.totalorder %s136, %s152
      %p154 = scmp.eq.s32.totalorder %s23, 0
      %p155 = por %p153, %p154
      %p156 = scmp.le.s32.totalorder 1, %s17
      %p157 = scmp.lt.s32.totalorder %s17, 3
      %p158 = pnand %p156, %p157
      %p159 = pneg %p158
      // Predicated region
      $region9: #{binary_diff_forward.1} parent=5 // pred_check
        _
      $region10: #{binary_diff_forward.1} parent=5 // pred_check_branch
        %161 = sbr.rel (%p158) target = $region12
      $region11: #{binary_diff_forward.1} parent=5 // pred_region
        %s162 = ssub.s32 %s17, 1
        // Predicated region
        $region13: #{binary_diff_forward.1} parent=11 // pred_check
          %p163 = pneg %p64
        $region14: #{binary_diff_forward.1} parent=11 // pred_check_branch
          %165 = sbr.rel (%p163) target = $region16
        $region15: #{binary_diff_forward.1} parent=11 // pred_region
          %s166 = smul.u32 2, %s27
          %s167 = smul.u32 4, %s29
          %p168 = scmp.lt.s32.totalorder %s166, 1
          %s169 = scalar_select %p168, %s166, 1
          %p170 = scmp.lt.s32.totalorder %s167, 3
          %s171 = scalar_select %p170, %s167, 3
          %s172 = smul.addr %s169, 4
          %s173 = sadd.s32 %s171, %s172
          %s174 = smul.addr %s173, 4
          %s175 = scalar_lea.vmem %s1, %s174
          %s176 = smul.u32 2, %s27
          %s177 = smul.u32 4, %s29
        $region16: #{binary_diff_forward.1} parent=11 // pred_fallthru
          _
      $region12: #{binary_diff_forward.1} parent=5 // pred_fallthru
        _
      %p178 = scmp.lt.s32.totalorder %s17, 2
      // Predicated region
      $region17: #{binary_diff_forward.1} parent=5 // pred_check
        %p179 = pneg %p178
      $region18: #{binary_diff_forward.1} parent=5 // pred_check_branch
        %181 = sbr.rel (%p179) target = $region20
      $region19: #{binary_diff_forward.1} parent=5 // pred_region
        // Predicated region
        $region21: #{binary_diff_forward.1} parent=19 // pred_check
          %p182 = pneg %p86
        $region22: #{binary_diff_forward.1} parent=19 // pred_check_branch
          %184 = sbr.rel (%p182) target = $region24
        $region23: #{binary_diff_forward.1} parent=19 // pred_region
          %s185 = sand.u32 %s76, 1
          %s186 = scalar_lea.sflag [#allocation6], %s185
          %s187 = sand.u32 %s76, 1
          %s188 = smul.addr %s187, 512
          %s189 = scalar_lea.vmem [#allocation5], %s188
          %s190 = smul.u32 64, %s26
          %s191 = smul.u32 2, %s25
          %s193 = ssub.s32 8192, 8192
          %194 = vsyncadd %s186, %s193
          %s195 = smul.addr %s190, 4
          %s196 = sadd.s32 %s191, %s195
          %s197 = smul.addr %s196, 64
          %s198 = scalar_lea.hbm %s2, %s197
          %s199 = sshll.u32 %s189, 4
          %s200 = int_to_ptr.vmem [resolvable:$true] %s199
          %205 = dma.hbm_to_vmem [thread:$0]  %s198, 8192, %s200, %s186, 256, 128, 8
        $region24: #{binary_diff_forward.1} parent=19 // pred_fallthru
          _
        // Predicated region
        $region25: #{binary_diff_forward.1} parent=19 // pred_check
          %p206 = pneg %p114
        $region26: #{binary_diff_forward.1} parent=19 // pred_check_branch
          %208 = sbr.rel (%p206) target = $region28
        $region27: #{binary_diff_forward.1} parent=19 // pred_region
          %s209 = sand.u32 %s104, 1
          %s210 = scalar_lea.sflag [#allocation8], %s209
          %s211 = sand.u32 %s104, 1
          %s212 = smul.addr %s211, 256
          %s213 = scalar_lea.vmem [#allocation7], %s212
          %s214 = smul.u32 16, %s26
          %s215 = smul.u32 2, %s25
          %s217 = ssub.s32 4096, 4096
          %218 = vsyncadd %s210, %s217
          %s219 = smul.addr %s214, 4
          %s220 = sadd.s32 %s215, %s219
          %s221 = smul.addr %s220, 128
          %s222 = scalar_lea.hbm %s3, %s221
          %s223 = sshll.u32 %s213, 4
          %s224 = int_to_ptr.vmem [resolvable:$true] %s223
          %229 = dma.hbm_to_vmem [thread:$0]  %s222, 4096, %s224, %s210, 512, 256, 16
        $region28: #{binary_diff_forward.1} parent=19 // pred_fallthru
          _
      $region20: #{binary_diff_forward.1} parent=5 // pred_fallthru
        _
      %p230 = scmp.le.s32.totalorder 1, %s17
      %p231 = scmp.lt.s32.totalorder %s17, 3
      %p232 = pnand %p230, %p231
      %p233 = pneg %p232
      // Predicated region
      $region29: #{binary_diff_forward.1} parent=5 // pred_check
        _
      $region30: #{binary_diff_forward.1} parent=5 // pred_check_branch
        %235 = sbr.rel (%p232) target = $region32
      $region31: #{binary_diff_forward.1} parent=5 // pred_region
        %s236 = ssub.s32 %s17, 1
        %s237 = sand.u32 %s79, 1
        %s238 = scalar_lea.sflag [#allocation6], %s237
        %s239 = sand.u32 %s79, 1
        %s240 = smul.addr %s239, 512
        %s241 = scalar_lea.vmem [#allocation5], %s240
        // Predicated region
        $region33: #{binary_diff_forward.1} parent=31 // pred_check
          %p242 = pneg %p92
        $region34: #{binary_diff_forward.1} parent=31 // pred_check_branch
          %244 = sbr.rel (%p242) target = $region36
        $region35: #{binary_diff_forward.1} parent=31 // pred_region
          %245 = dma.done %s238, 8192
        $region36: #{binary_diff_forward.1} parent=31 // pred_fallthru
          _
        %s246 = sand.u32 %s107, 1
        %s247 = scalar_lea.sflag [#allocation8], %s246
        %s248 = sand.u32 %s107, 1
        %s249 = smul.addr %s248, 256
        %s250 = scalar_lea.vmem [#allocation7], %s249
        // Predicated region
        $region37: #{binary_diff_forward.1} parent=31 // pred_check
          %p251 = pneg %p120
        $region38: #{binary_diff_forward.1} parent=31 // pred_check_branch
          %253 = sbr.rel (%p251) target = $region40
        $region39: #{binary_diff_forward.1} parent=31 // pred_region
          %254 = dma.done %s247, 4096
        $region40: #{binary_diff_forward.1} parent=31 // pred_fallthru
          _
        %s255 = smul.u32 2, %s27
        %s256 = smul.u32 4, %s29
        %p257 = scmp.lt.s32.totalorder %s255, 1
        %s258 = scalar_select %p257, %s255, 1
        %p259 = scmp.lt.s32.totalorder %s256, 3
        %s260 = scalar_select %p259, %s256, 3
        %s261 = smul.addr %s258, 4
        %s262 = sadd.s32 %s260, %s261
        %s263 = smul.addr %s262, 4
        %s264 = scalar_lea.vmem %s1, %s263
        %p265 = pneg %p64
        %p266 = pneg %p61
        %s267 = sand.u32 %s79, 1
        %s268 = scalar_lea.sflag [#allocation6], %s267
        %s269 = sand.u32 %s79, 1
        %s270 = smul.addr %s269, 512
        %s271 = scalar_lea.vmem [#allocation5], %s270
        %p272 = pneg %p92
        %p273 = pneg %p89
        %s274 = sand.u32 %s107, 1
        %s275 = scalar_lea.sflag [#allocation8], %s274
        %s276 = sand.u32 %s107, 1
        %s277 = smul.addr %s276, 256
        %s278 = scalar_lea.vmem [#allocation7], %s277
        %p279 = pneg %p120
        %p280 = pneg %p117
        %p281 = pneg %p148
        %p282 = pneg %p145
        %s283 = sand.u32 %s135, 1
        %s284 = sand.u32 %s135, 1
        %s285 = smul.addr %s284, 32
        %s286 = scalar_lea.vmem [#allocation9], %s285
        %s287 = smul.u32 2, %s27
        %s288 = smul.u32 4, %s29
        %p289 = scmp.lt.s32.totalorder %s287, 1
        %s290 = scalar_select %p289, %s287, 1
        %p291 = scmp.lt.s32.totalorder %s288, 3
        %s292 = scalar_select %p291, %s288, 3
        %s293 = smul.addr %s290, 4
        %s294 = sadd.s32 %s292, %s293
        %s295 = smul.addr %s294, 4
        %s296 = scalar_lea.vmem %s1, %s295
        %s297 = smul.u32 2, %s27
        %s298 = smul.u32 4, %s29
        %s299 = smul.u32 64, %s29
        %s300 = smul.u32 2, %s28
        %s301 = smul.u32 16, %s29
        %s302 = smul.u32 2, %s28
        %s303 = smul.u32 2, %s27
        %s304 = smul.u32 2, %s28
        %p305 = scmp.eq.s32.totalorder %s29, 0
        // Predicated region
        $region41: #{binary_diff_forward.1} parent=31 // pred_check
          %p306 = pneg %p305
        $region42: #{binary_diff_forward.1} parent=31 // pred_check_branch
          %308 = sbr.rel (%p306) target = $region44
        $region43: #{binary_diff_forward.1} parent=31 // pred_region
          %309 = vst [vmem:[#allocation2] sm:$0xff] 0.0
          %310 = vst [vmem:[#allocation2 + $0x8] sm:$0xff] 0.0
          %311 = vst [vmem:[#allocation2 + $0x10] sm:$0xff] 0.0
          %312 = vst [vmem:[#allocation2 + $0x18] sm:$0xff] 0.0
        $region44: #{binary_diff_forward.1} parent=31 // pred_fallthru
          _
        %s313 = sld [smem:[#allocation4]]
        %p315 = scmp.ne.f32.partialorder %s313, %s313
        %s316 = sshrl.u32 %s313, 16
        %s317 = sand.u32 %s316, 1
        %s318 = sadd.s32 32767, %s317
        %s319 = sadd.s32 %s313, %s318
        %s320 = sand.u32 %s319, 4294901760
        %s321 = scalar_select %p315, 2143289344, %s320
        %s323 = sshrl.u32 %s321, 16
        %v324 = vld [vmem:[%s241] sm:$0xff]
        %v325 = vld [vmem:[%s241 + $0x8] sm:$0xff]
        %v326 = vld [vmem:[%s241 + $0x10] sm:$0xff]
        %v327 = vld [vmem:[%s241 + $0x18] sm:$0xff]
        %v328 = vld [vmem:[%s241 + $0x20] sm:$0xff]
        %v329 = vld [vmem:[%s241 + $0x28] sm:$0xff]
        %v330 = vld [vmem:[%s241 + $0x30] sm:$0xff]
        %v331 = vld [vmem:[%s241 + $0x38] sm:$0xff]
        %v332 = vld [vmem:[%s241 + $0x40] sm:$0xff]
        %v333 = vld [vmem:[%s241 + $0x48] sm:$0xff]
        %v334 = vld [vmem:[%s241 + $0x50] sm:$0xff]
        %v335 = vld [vmem:[%s241 + $0x58] sm:$0xff]
        %v336 = vld [vmem:[%s241 + $0x60] sm:$0xff]
        %v337 = vld [vmem:[%s241 + $0x68] sm:$0xff]
        %v338 = vld [vmem:[%s241 + $0x70] sm:$0xff]
        %v339 = vld [vmem:[%s241 + $0x78] sm:$0xff]
        %v340 = vld [vmem:[%s241 + $0x80] sm:$0xff]
        %v341 = vld [vmem:[%s241 + $0x88] sm:$0xff]
        %v342 = vld [vmem:[%s241 + $0x90] sm:$0xff]
        %v343 = vld [vmem:[%s241 + $0x98] sm:$0xff]
        %v344 = vld [vmem:[%s241 + $0xa0] sm:$0xff]
        %v345 = vld [vmem:[%s241 + $0xa8] sm:$0xff]
        %v346 = vld [vmem:[%s241 + $0xb0] sm:$0xff]
        %v347 = vld [vmem:[%s241 + $0xb8] sm:$0xff]
        %v348 = vld [vmem:[%s241 + $0xc0] sm:$0xff]
        %v349 = vld [vmem:[%s241 + $0xc8] sm:$0xff]
        %v350 = vld [vmem:[%s241 + $0xd0] sm:$0xff]
        %v351 = vld [vmem:[%s241 + $0xd8] sm:$0xff]
        %v352 = vld [vmem:[%s241 + $0xe0] sm:$0xff]
        %v353 = vld [vmem:[%s241 + $0xe8] sm:$0xff]
        %v354 = vld [vmem:[%s241 + $0xf0] sm:$0xff]
        %v355 = vld [vmem:[%s241 + $0xf8] sm:$0xff]
        %v356 = vld [vmem:[%s241 + $0x100] sm:$0xff]
        %v357 = vld [vmem:[%s241 + $0x108] sm:$0xff]
        %v358 = vld [vmem:[%s241 + $0x110] sm:$0xff]
        %v359 = vld [vmem:[%s241 + $0x118] sm:$0xff]
        %v360 = vld [vmem:[%s241 + $0x120] sm:$0xff]
        %v361 = vld [vmem:[%s241 + $0x128] sm:$0xff]
        %v362 = vld [vmem:[%s241 + $0x130] sm:$0xff]
        %v363 = vld [vmem:[%s241 + $0x138] sm:$0xff]
        %v364 = vld [vmem:[%s241 + $0x140] sm:$0xff]
        %v365 = vld [vmem:[%s241 + $0x148] sm:$0xff]
        %v366 = vld [vmem:[%s241 + $0x150] sm:$0xff]
        %v367 = vld [vmem:[%s241 + $0x158] sm:$0xff]
        %v368 = vld [vmem:[%s241 + $0x160] sm:$0xff]
        %v369 = vld [vmem:[%s241 + $0x168] sm:$0xff]
        %v370 = vld [vmem:[%s241 + $0x170] sm:$0xff]
        %v371 = vld [vmem:[%s241 + $0x178] sm:$0xff]
        %v372 = vld [vmem:[%s241 + $0x180] sm:$0xff]
        %v373 = vld [vmem:[%s241 + $0x188] sm:$0xff]
        %v374 = vld [vmem:[%s241 + $0x190] sm:$0xff]
        %v375 = vld [vmem:[%s241 + $0x198] sm:$0xff]
        %v376 = vld [vmem:[%s241 + $0x1a0] sm:$0xff]
        %v377 = vld [vmem:[%s241 + $0x1a8] sm:$0xff]
        %v378 = vld [vmem:[%s241 + $0x1b0] sm:$0xff]
        %v379 = vld [vmem:[%s241 + $0x1b8] sm:$0xff]
        %v380 = vld [vmem:[%s241 + $0x1c0] sm:$0xff]
        %v381 = vld [vmem:[%s241 + $0x1c8] sm:$0xff]
        %v382 = vld [vmem:[%s241 + $0x1d0] sm:$0xff]
        %v383 = vld [vmem:[%s241 + $0x1d8] sm:$0xff]
        %v384 = vld [vmem:[%s241 + $0x1e0] sm:$0xff]
        %v385 = vld [vmem:[%s241 + $0x1e8] sm:$0xff]
        %v386 = vld [vmem:[%s241 + $0x1f0] sm:$0xff]
        %v387 = vld [vmem:[%s241 + $0x1f8] sm:$0xff]
        %v388 = vld [vmem:[%s250] sm:$0xff]
        %v389 = vld [vmem:[%s250 + $0x8] sm:$0xff]
        %v390 = vld [vmem:[%s250 + $0x10] sm:$0xff]
        %v391 = vld [vmem:[%s250 + $0x18] sm:$0xff]
        %v392 = vld [vmem:[%s250 + $0x20] sm:$0xff]
        %v393 = vld [vmem:[%s250 + $0x28] sm:$0xff]
        %v394 = vld [vmem:[%s250 + $0x30] sm:$0xff]
        %v395 = vld [vmem:[%s250 + $0x38] sm:$0xff]
        %v396 = vld [vmem:[%s250 + $0x40] sm:$0xff]
        %v397 = vld [vmem:[%s250 + $0x48] sm:$0xff]
        %v398 = vld [vmem:[%s250 + $0x50] sm:$0xff]
        %v399 = vld [vmem:[%s250 + $0x58] sm:$0xff]
        %v400 = vld [vmem:[%s250 + $0x60] sm:$0xff]
        %v401 = vld [vmem:[%s250 + $0x68] sm:$0xff]
        %v402 = vld [vmem:[%s250 + $0x70] sm:$0xff]
        %v403 = vld [vmem:[%s250 + $0x78] sm:$0xff]
        %v404 = vld [vmem:[%s250 + $0x80] sm:$0xff]
        %v405 = vld [vmem:[%s250 + $0x88] sm:$0xff]
        %v406 = vld [vmem:[%s250 + $0x90] sm:$0xff]
        %v407 = vld [vmem:[%s250 + $0x98] sm:$0xff]
        %v408 = vld [vmem:[%s250 + $0xa0] sm:$0xff]
        %v409 = vld [vmem:[%s250 + $0xa8] sm:$0xff]
        %v410 = vld [vmem:[%s250 + $0xb0] sm:$0xff]
        %v411 = vld [vmem:[%s250 + $0xb8] sm:$0xff]
        %v412 = vld [vmem:[%s250 + $0xc0] sm:$0xff]
        %v413 = vld [vmem:[%s250 + $0xc8] sm:$0xff]
        %v414 = vld [vmem:[%s250 + $0xd0] sm:$0xff]
        %v415 = vld [vmem:[%s250 + $0xd8] sm:$0xff]
        %v416 = vld [vmem:[%s250 + $0xe0] sm:$0xff]
        %v417 = vld [vmem:[%s250 + $0xe8] sm:$0xff]
        %v418 = vld [vmem:[%s250 + $0xf0] sm:$0xff]
        %v419 = vld [vmem:[%s250 + $0xf8] sm:$0xff]
        %v420 = vunpack.c.l.s8.bf16 %v388
        %v421 = vunpack.c.l.s8.bf16 %v389
        %v422 = vunpack.c.h.s8.bf16 %v388
        %v423 = vunpack.c.h.s8.bf16 %v389
        %v424 = vunpack.c.l.s8.bf16 %v390
        %v425 = vunpack.c.l.s8.bf16 %v391
        %v426 = vunpack.c.h.s8.bf16 %v390
        %v427 = vunpack.c.h.s8.bf16 %v391
        %v428 = vunpack.c.l.s8.bf16 %v392
        %v429 = vunpack.c.l.s8.bf16 %v393
        %v430 = vunpack.c.h.s8.bf16 %v392
        %v431 = vunpack.c.h.s8.bf16 %v393
        %v432 = vunpack.c.l.s8.bf16 %v394
        %v433 = vunpack.c.l.s8.bf16 %v395
        %v434 = vunpack.c.h.s8.bf16 %v394
        %v435 = vunpack.c.h.s8.bf16 %v395
        %v436 = vunpack.c.l.s8.bf16 %v396
        %v437 = vunpack.c.l.s8.bf16 %v397
        %v438 = vunpack.c.h.s8.bf16 %v396
        %v439 = vunpack.c.h.s8.bf16 %v397
        %v440 = vunpack.c.l.s8.bf16 %v398
        %v441 = vunpack.c.l.s8.bf16 %v399
        %v442 = vunpack.c.h.s8.bf16 %v398
        %v443 = vunpack.c.h.s8.bf16 %v399
        %v444 = vunpack.c.l.s8.bf16 %v400
        %v445 = vunpack.c.l.s8.bf16 %v401
        %v446 = vunpack.c.h.s8.bf16 %v400
        %v447 = vunpack.c.h.s8.bf16 %v401
        %v448 = vunpack.c.l.s8.bf16 %v402
        %v449 = vunpack.c.l.s8.bf16 %v403
        %v450 = vunpack.c.h.s8.bf16 %v402
        %v451 = vunpack.c.h.s8.bf16 %v403
        %v452 = vunpack.c.l.s8.bf16 %v404
        %v453 = vunpack.c.l.s8.bf16 %v405
        %v454 = vunpack.c.h.s8.bf16 %v404
        %v455 = vunpack.c.h.s8.bf16 %v405
        %v456 = vunpack.c.l.s8.bf16 %v406
        %v457 = vunpack.c.l.s8.bf16 %v407
        %v458 = vunpack.c.h.s8.bf16 %v406
        %v459 = vunpack.c.h.s8.bf16 %v407
        %v460 = vunpack.c.l.s8.bf16 %v408
        %v461 = vunpack.c.l.s8.bf16 %v409
        %v462 = vunpack.c.h.s8.bf16 %v408
        %v463 = vunpack.c.h.s8.bf16 %v409
        %v464 = vunpack.c.l.s8.bf16 %v410
        %v465 = vunpack.c.l.s8.bf16 %v411
        %v466 = vunpack.c.h.s8.bf16 %v410
        %v467 = vunpack.c.h.s8.bf16 %v411
        %v468 = vunpack.c.l.s8.bf16 %v412
        %v469 = vunpack.c.l.s8.bf16 %v413
        %v470 = vunpack.c.h.s8.bf16 %v412
        %v471 = vunpack.c.h.s8.bf16 %v413
        %v472 = vunpack.c.l.s8.bf16 %v414
        %v473 = vunpack.c.l.s8.bf16 %v415
        %v474 = vunpack.c.h.s8.bf16 %v414
        %v475 = vunpack.c.h.s8.bf16 %v415
        %v476 = vunpack.c.l.s8.bf16 %v416
        %v477 = vunpack.c.l.s8.bf16 %v417
        %v478 = vunpack.c.h.s8.bf16 %v416
        %v479 = vunpack.c.h.s8.bf16 %v417
        %v480 = vunpack.c.l.s8.bf16 %v418
        %v481 = vunpack.c.l.s8.bf16 %v419
        %v482 = vunpack.c.h.s8.bf16 %v418
        %v483 = vunpack.c.h.s8.bf16 %v419
        %s484 = sshll.u32 %s323, 16
        %s485 = sor.u32 %s323, %s484
        %v486 = vstv %s485
        %v488 = vmul.bf16 %v486, %v420
        %v489 = vmul.bf16 %v486, %v421
        %v490 = vmul.bf16 %v486, %v422
        %v491 = vmul.bf16 %v486, %v423
        %v492 = vmul.bf16 %v486, %v424
        %v493 = vmul.bf16 %v486, %v425
        %v494 = vmul.bf16 %v486, %v426
        %v495 = vmul.bf16 %v486, %v427
        %v496 = vmul.bf16 %v486, %v428
        %v497 = vmul.bf16 %v486, %v429
        %v498 = vmul.bf16 %v486, %v430
        %v499 = vmul.bf16 %v486, %v431
        %v500 = vmul.bf16 %v486, %v432
        %v501 = vmul.bf16 %v486, %v433
        %v502 = vmul.bf16 %v486, %v434
        %v503 = vmul.bf16 %v486, %v435
        %v504 = vmul.bf16 %v486, %v436
        %v505 = vmul.bf16 %v486, %v437
        %v506 = vmul.bf16 %v486, %v438
        %v507 = vmul.bf16 %v486, %v439
        %v508 = vmul.bf16 %v486, %v440
        %v509 = vmul.bf16 %v486, %v441
        %v510 = vmul.bf16 %v486, %v442
        %v511 = vmul.bf16 %v486, %v443
        %v512 = vmul.bf16 %v486, %v444
        %v513 = vmul.bf16 %v486, %v445
        %v514 = vmul.bf16 %v486, %v446
        %v515 = vmul.bf16 %v486, %v447
        %v516 = vmul.bf16 %v486, %v448
        %v517 = vmul.bf16 %v486, %v449
        %v518 = vmul.bf16 %v486, %v450
        %v519 = vmul.bf16 %v486, %v451
        %v520 = vmul.bf16 %v486, %v452
        %v521 = vmul.bf16 %v486, %v453
        %v522 = vmul.bf16 %v486, %v454
        %v523 = vmul.bf16 %v486, %v455
        %v524 = vmul.bf16 %v486, %v456
        %v525 = vmul.bf16 %v486, %v457
        %v526 = vmul.bf16 %v486, %v458
        %v527 = vmul.bf16 %v486, %v459
        %v528 = vmul.bf16 %v486, %v460
        %v529 = vmul.bf16 %v486, %v461
        %v530 = vmul.bf16 %v486, %v462
        %v531 = vmul.bf16 %v486, %v463
        %v532 = vmul.bf16 %v486, %v464
        %v533 = vmul.bf16 %v486, %v465
        %v534 = vmul.bf16 %v486, %v466
        %v535 = vmul.bf16 %v486, %v467
        %v536 = vmul.bf16 %v486, %v468
        %v537 = vmul.bf16 %v486, %v469
        %v538 = vmul.bf16 %v486, %v470
        %v539 = vmul.bf16 %v486, %v471
        %v540 = vmul.bf16 %v486, %v472
        %v541 = vmul.bf16 %v486, %v473
        %v542 = vmul.bf16 %v486, %v474
        %v543 = vmul.bf16 %v486, %v475
        %v544 = vmul.bf16 %v486, %v476
        %v545 = vmul.bf16 %v486, %v477
        %v546 = vmul.bf16 %v486, %v478
        %v547 = vmul.bf16 %v486, %v479
        %v548 = vmul.bf16 %v486, %v480
        %v549 = vmul.bf16 %v486, %v481
        %v550 = vmul.bf16 %v486, %v482
        %v551 = vmul.bf16 %v486, %v483
        %v616 = vunpack.c.l.b16 %v488
        %v617 = vunpack.c.l.b16 %v489
        %v618 = vunpack.c.h.b16 %v488
        %v619 = vunpack.c.h.b16 %v489
        %v620 = vunpack.c.l.b16 %v490
        %v621 = vunpack.c.l.b16 %v491
        %v622 = vunpack.c.h.b16 %v490
        %v623 = vunpack.c.h.b16 %v491
        %v624 = vunpack.c.l.b16 %v492
        %v625 = vunpack.c.l.b16 %v493
        %v626 = vunpack.c.h.b16 %v492
        %v627 = vunpack.c.h.b16 %v493
        %v628 = vunpack.c.l.b16 %v494
        %v629 = vunpack.c.l.b16 %v495
        %v630 = vunpack.c.h.b16 %v494
        %v631 = vunpack.c.h.b16 %v495
        %v632 = vunpack.c.l.b16 %v496
        %v633 = vunpack.c.l.b16 %v497
        %v634 = vunpack.c.h.b16 %v496
        %v635 = vunpack.c.h.b16 %v497
        %v636 = vunpack.c.l.b16 %v498
        %v637 = vunpack.c.l.b16 %v499
        %v638 = vunpack.c.h.b16 %v498
        %v639 = vunpack.c.h.b16 %v499
        %v640 = vunpack.c.l.b16 %v500
        %v641 = vunpack.c.l.b16 %v501
        %v642 = vunpack.c.h.b16 %v500
        %v643 = vunpack.c.h.b16 %v501
        %v644 = vunpack.c.l.b16 %v502
        %v645 = vunpack.c.l.b16 %v503
        %v646 = vunpack.c.h.b16 %v502
        %v647 = vunpack.c.h.b16 %v503
        %v648 = vunpack.c.l.b16 %v504
        %v649 = vunpack.c.l.b16 %v505
        %v650 = vunpack.c.h.b16 %v504
        %v651 = vunpack.c.h.b16 %v505
        %v652 = vunpack.c.l.b16 %v506
        %v653 = vunpack.c.l.b16 %v507
        %v654 = vunpack.c.h.b16 %v506
        %v655 = vunpack.c.h.b16 %v507
        %v656 = vunpack.c.l.b16 %v508
        %v657 = vunpack.c.l.b16 %v509
        %v658 = vunpack.c.h.b16 %v508
        %v659 = vunpack.c.h.b16 %v509
        %v660 = vunpack.c.l.b16 %v510
        %v661 = vunpack.c.l.b16 %v511
        %v662 = vunpack.c.h.b16 %v510
        %v663 = vunpack.c.h.b16 %v511
        %v664 = vunpack.c.l.b16 %v512
        %v665 = vunpack.c.l.b16 %v513
        %v666 = vunpack.c.h.b16 %v512
        %v667 = vunpack.c.h.b16 %v513
        %v668 = vunpack.c.l.b16 %v514
        %v669 = vunpack.c.l.b16 %v515
        %v670 = vunpack.c.h.b16 %v514
        %v671 = vunpack.c.h.b16 %v515
        %v672 = vunpack.c.l.b16 %v516
        %v673 = vunpack.c.l.b16 %v517
        %v674 = vunpack.c.h.b16 %v516
        %v675 = vunpack.c.h.b16 %v517
        %v676 = vunpack.c.l.b16 %v518
        %v677 = vunpack.c.l.b16 %v519
        %v678 = vunpack.c.h.b16 %v518
        %v679 = vunpack.c.h.b16 %v519
        %v680 = vunpack.c.l.b16 %v520
        %v681 = vunpack.c.l.b16 %v521
        %v682 = vunpack.c.h.b16 %v520
        %v683 = vunpack.c.h.b16 %v521
        %v684 = vunpack.c.l.b16 %v522
        %v685 = vunpack.c.l.b16 %v523
        %v686 = vunpack.c.h.b16 %v522
        %v687 = vunpack.c.h.b16 %v523
        %v688 = vunpack.c.l.b16 %v524
        %v689 = vunpack.c.l.b16 %v525
        %v690 = vunpack.c.h.b16 %v524
        %v691 = vunpack.c.h.b16 %v525
        %v692 = vunpack.c.l.b16 %v526
        %v693 = vunpack.c.l.b16 %v527
        %v694 = vunpack.c.h.b16 %v526
        %v695 = vunpack.c.h.b16 %v527
        %v696 = vunpack.c.l.b16 %v528
        %v697 = vunpack.c.l.b16 %v529
        %v698 = vunpack.c.h.b16 %v528
        %v699 = vunpack.c.h.b16 %v529
        %v700 = vunpack.c.l.b16 %v530
        %v701 = vunpack.c.l.b16 %v531
        %v702 = vunpack.c.h.b16 %v530
        %v703 = vunpack.c.h.b16 %v531
        %v704 = vunpack.c.l.b16 %v532
        %v705 = vunpack.c.l.b16 %v533
        %v706 = vunpack.c.h.b16 %v532
        %v707 = vunpack.c.h.b16 %v533
        %v708 = vunpack.c.l.b16 %v534
        %v709 = vunpack.c.l.b16 %v535
        %v710 = vunpack.c.h.b16 %v534
        %v711 = vunpack.c.h.b16 %v535
        %v712 = vunpack.c.l.b16 %v536
        %v713 = vunpack.c.l.b16 %v537
        %v714 = vunpack.c.h.b16 %v536
        %v715 = vunpack.c.h.b16 %v537
        %v716 = vunpack.c.l.b16 %v538
        %v717 = vunpack.c.l.b16 %v539
        %v718 = vunpack.c.h.b16 %v538
        %v719 = vunpack.c.h.b16 %v539
        %v720 = vunpack.c.l.b16 %v540
        %v721 = vunpack.c.l.b16 %v541
        %v722 = vunpack.c.h.b16 %v540
        %v723 = vunpack.c.h.b16 %v541
        %v724 = vunpack.c.l.b16 %v542
        %v725 = vunpack.c.l.b16 %v543
        %v726 = vunpack.c.h.b16 %v542
        %v727 = vunpack.c.h.b16 %v543
        %v728 = vunpack.c.l.b16 %v544
        %v729 = vunpack.c.l.b16 %v545
        %v730 = vunpack.c.h.b16 %v544
        %v731 = vunpack.c.h.b16 %v545
        %v732 = vunpack.c.l.b16 %v546
        %v733 = vunpack.c.l.b16 %v547
        %v734 = vunpack.c.h.b16 %v546
        %v735 = vunpack.c.h.b16 %v547
        %v736 = vunpack.c.l.b16 %v548
        %v737 = vunpack.c.l.b16 %v549
        %v738 = vunpack.c.h.b16 %v548
        %v739 = vunpack.c.h.b16 %v549
        %v740 = vunpack.c.l.b16 %v550
        %v741 = vunpack.c.l.b16 %v551
        %v742 = vunpack.c.h.b16 %v550
        %v743 = vunpack.c.h.b16 %v551
        %v744 = vpack.c.b16 %v617, %v616
        %v745 = vpack.c.b16 %v619, %v618
        %v746 = vpack.c.b16 %v621, %v620
        %v747 = vpack.c.b16 %v623, %v622
        %v748 = vpack.c.b16 %v625, %v624
        %v749 = vpack.c.b16 %v627, %v626
        %v750 = vpack.c.b16 %v629, %v628
        %v751 = vpack.c.b16 %v631, %v630
        %v752 = vpack.c.b16 %v633, %v632
        %v753 = vpack.c.b16 %v635, %v634
        %v754 = vpack.c.b16 %v637, %v636
        %v755 = vpack.c.b16 %v639, %v638
        %v756 = vpack.c.b16 %v641, %v640
        %v757 = vpack.c.b16 %v643, %v642
        %v758 = vpack.c.b16 %v645, %v644
        %v759 = vpack.c.b16 %v647, %v646
        %v760 = vpack.c.b16 %v649, %v648
        %v761 = vpack.c.b16 %v651, %v650
        %v762 = vpack.c.b16 %v653, %v652
        %v763 = vpack.c.b16 %v655, %v654
        %v764 = vpack.c.b16 %v657, %v656
        %v765 = vpack.c.b16 %v659, %v658
        %v766 = vpack.c.b16 %v661, %v660
        %v767 = vpack.c.b16 %v663, %v662
        %v768 = vpack.c.b16 %v665, %v664
        %v769 = vpack.c.b16 %v667, %v666
        %v770 = vpack.c.b16 %v669, %v668
        %v771 = vpack.c.b16 %v671, %v670
        %v772 = vpack.c.b16 %v673, %v672
        %v773 = vpack.c.b16 %v675, %v674
        %v774 = vpack.c.b16 %v677, %v676
        %v775 = vpack.c.b16 %v679, %v678
        %v776 = vpack.c.b16 %v681, %v680
        %v777 = vpack.c.b16 %v683, %v682
        %v778 = vpack.c.b16 %v685, %v684
        %v779 = vpack.c.b16 %v687, %v686
        %v780 = vpack.c.b16 %v689, %v688
        %v781 = vpack.c.b16 %v691, %v690
        %v782 = vpack.c.b16 %v693, %v692
        %v783 = vpack.c.b16 %v695, %v694
        %v784 = vpack.c.b16 %v697, %v696
        %v785 = vpack.c.b16 %v699, %v698
        %v786 = vpack.c.b16 %v701, %v700
        %v787 = vpack.c.b16 %v703, %v702
        %v788 = vpack.c.b16 %v705, %v704
        %v789 = vpack.c.b16 %v707, %v706
        %v790 = vpack.c.b16 %v709, %v708
        %v791 = vpack.c.b16 %v711, %v710
        %v792 = vpack.c.b16 %v713, %v712
        %v793 = vpack.c.b16 %v715, %v714
        %v794 = vpack.c.b16 %v717, %v716
        %v795 = vpack.c.b16 %v719, %v718
        %v796 = vpack.c.b16 %v721, %v720
        %v797 = vpack.c.b16 %v723, %v722
        %v798 = vpack.c.b16 %v725, %v724
        %v799 = vpack.c.b16 %v727, %v726
        %v800 = vpack.c.b16 %v729, %v728
        %v801 = vpack.c.b16 %v731, %v730
        %v802 = vpack.c.b16 %v733, %v732
        %v803 = vpack.c.b16 %v735, %v734
        %v804 = vpack.c.b16 %v737, %v736
        %v805 = vpack.c.b16 %v739, %v738
        %v806 = vpack.c.b16 %v741, %v740
        %v807 = vpack.c.b16 %v743, %v742
        %v872 = vadd.bf16 %v324, %v744
        %v873 = vadd.bf16 %v325, %v745
        %v874 = vadd.bf16 %v326, %v746
        %v875 = vadd.bf16 %v327, %v747
        %v876 = vadd.bf16 %v328, %v748
        %v877 = vadd.bf16 %v329, %v749
        %v878 = vadd.bf16 %v330, %v750
        %v879 = vadd.bf16 %v331, %v751
        %v880 = vadd.bf16 %v332, %v752
        %v881 = vadd.bf16 %v333, %v753
        %v882 = vadd.bf16 %v334, %v754
        %v883 = vadd.bf16 %v335, %v755
        %v884 = vadd.bf16 %v336, %v756
        %v885 = vadd.bf16 %v337, %v757
        %v886 = vadd.bf16 %v338, %v758
        %v887 = vadd.bf16 %v339, %v759
        %v888 = vadd.bf16 %v340, %v760
        %v889 = vadd.bf16 %v341, %v761
        %v890 = vadd.bf16 %v342, %v762
        %v891 = vadd.bf16 %v343, %v763
        %v892 = vadd.bf16 %v344, %v764
        %v893 = vadd.bf16 %v345, %v765
        %v894 = vadd.bf16 %v346, %v766
        %v895 = vadd.bf16 %v347, %v767
        %v896 = vadd.bf16 %v348, %v768
        %v897 = vadd.bf16 %v349, %v769
        %v898 = vadd.bf16 %v350, %v770
        %v899 = vadd.bf16 %v351, %v771
        %v900 = vadd.bf16 %v352, %v772
        %v901 = vadd.bf16 %v353, %v773
        %v902 = vadd.bf16 %v354, %v774
        %v903 = vadd.bf16 %v355, %v775
        %v904 = vadd.bf16 %v356, %v776
        %v905 = vadd.bf16 %v357, %v777
        %v906 = vadd.bf16 %v358, %v778
        %v907 = vadd.bf16 %v359, %v779
        %v908 = vadd.bf16 %v360, %v780
        %v909 = vadd.bf16 %v361, %v781
        %v910 = vadd.bf16 %v362, %v782
        %v911 = vadd.bf16 %v363, %v783
        %v912 = vadd.bf16 %v364, %v784
        %v913 = vadd.bf16 %v365, %v785
        %v914 = vadd.bf16 %v366, %v786
        %v915 = vadd.bf16 %v367, %v787
        %v916 = vadd.bf16 %v368, %v788
        %v917 = vadd.bf16 %v369, %v789
        %v918 = vadd.bf16 %v370, %v790
        %v919 = vadd.bf16 %v371, %v791
        %v920 = vadd.bf16 %v372, %v792
        %v921 = vadd.bf16 %v373, %v793
        %v922 = vadd.bf16 %v374, %v794
        %v923 = vadd.bf16 %v375, %v795
        %v924 = vadd.bf16 %v376, %v796
        %v925 = vadd.bf16 %v377, %v797
        %v926 = vadd.bf16 %v378, %v798
        %v927 = vadd.bf16 %v379, %v799
        %v928 = vadd.bf16 %v380, %v800
        %v929 = vadd.bf16 %v381, %v801
        %v930 = vadd.bf16 %v382, %v802
        %v931 = vadd.bf16 %v383, %v803
        %v932 = vadd.bf16 %v384, %v804
        %v933 = vadd.bf16 %v385, %v805
        %v934 = vadd.bf16 %v386, %v806
        %v935 = vadd.bf16 %v387, %v807
        %v936 = vld [vmem:[#allocation2] sm:$0xff]
        %v937 = vld [vmem:[#allocation2 + $0x8] sm:$0xff]
        %v938 = vld [vmem:[#allocation2 + $0x10] sm:$0xff]
        %v939 = vld [vmem:[#allocation2 + $0x18] sm:$0xff]
        %v940 = vld [vmem:[%s296] sm:$0xff]
        %v941 = vld [vmem:[%s296 + $0x8] sm:$0xff]
        %v942 = vld [vmem:[%s296 + $0x10] sm:$0xff]
        %v943 = vld [vmem:[%s296 + $0x18] sm:$0xff]
        %v948 = vunpack.c.l.b16 %v940
        %v949 = vunpack.c.h.b16 %v940
        %v950 = vunpack.c.l.b16 %v941
        %v951 = vunpack.c.h.b16 %v941
        %v952 = vunpack.c.l.b16 %v942
        %v953 = vunpack.c.h.b16 %v942
        %v954 = vunpack.c.l.b16 %v943
        %v955 = vunpack.c.h.b16 %v943
        %v956 = vpack.c.b16 %v952, %v948
        %v957 = vpack.c.b16 %v953, %v949
        %v958 = vpack.c.b16 %v954, %v950
        %v959 = vpack.c.b16 %v955, %v951
        %v1028 = vunpack.c.l.b16 %v872
        %v1029 = vunpack.c.h.b16 %v872
        %v1030 = vunpack.c.l.b16 %v873
        %v1031 = vunpack.c.h.b16 %v873
        %v1032 = vunpack.c.l.b16 %v874
        %v1033 = vunpack.c.h.b16 %v874
        %v1034 = vunpack.c.l.b16 %v875
        %v1035 = vunpack.c.h.b16 %v875
        %v1036 = vunpack.c.l.b16 %v876
        %v1037 = vunpack.c.h.b16 %v876
        %v1038 = vunpack.c.l.b16 %v877
        %v1039 = vunpack.c.h.b16 %v877
        %v1040 = vunpack.c.l.b16 %v878
        %v1041 = vunpack.c.h.b16 %v878
        %v1042 = vunpack.c.l.b16 %v879
        %v1043 = vunpack.c.h.b16 %v879
        %v1044 = vunpack.c.l.b16 %v880
        %v1045 = vunpack.c.h.b16 %v880
        %v1046 = vunpack.c.l.b16 %v881
        %v1047 = vunpack.c.h.b16 %v881
        %v1048 = vunpack.c.l.b16 %v882
        %v1049 = vunpack.c.h.b16 %v882
        %v1050 = vunpack.c.l.b16 %v883
        %v1051 = vunpack.c.h.b16 %v883
        %v1052 = vunpack.c.l.b16 %v884
        %v1053 = vunpack.c.h.b16 %v884
        %v1054 = vunpack.c.l.b16 %v885
        %v1055 = vunpack.c.h.b16 %v885
        %v1056 = vunpack.c.l.b16 %v886
        %v1057 = vunpack.c.h.b16 %v886
        %v1058 = vunpack.c.l.b16 %v887
        %v1059 = vunpack.c.h.b16 %v887
        %v1060 = vunpack.c.l.b16 %v888
        %v1061 = vunpack.c.h.b16 %v888
        %v1062 = vunpack.c.l.b16 %v889
        %v1063 = vunpack.c.h.b16 %v889
        %v1064 = vunpack.c.l.b16 %v890
        %v1065 = vunpack.c.h.b16 %v890
        %v1066 = vunpack.c.l.b16 %v891
        %v1067 = vunpack.c.h.b16 %v891
        %v1068 = vunpack.c.l.b16 %v892
        %v1069 = vunpack.c.h.b16 %v892
        %v1070 = vunpack.c.l.b16 %v893
        %v1071 = vunpack.c.h.b16 %v893
        %v1072 = vunpack.c.l.b16 %v894
        %v1073 = vunpack.c.h.b16 %v894
        %v1074 = vunpack.c.l.b16 %v895
        %v1075 = vunpack.c.h.b16 %v895
        %v1076 = vunpack.c.l.b16 %v896
        %v1077 = vunpack.c.h.b16 %v896
        %v1078 = vunpack.c.l.b16 %v897
        %v1079 = vunpack.c.h.b16 %v897
        %v1080 = vunpack.c.l.b16 %v898
        %v1081 = vunpack.c.h.b16 %v898
        %v1082 = vunpack.c.l.b16 %v899
        %v1083 = vunpack.c.h.b16 %v899
        %v1084 = vunpack.c.l.b16 %v900
        %v1085 = vunpack.c.h.b16 %v900
        %v1086 = vunpack.c.l.b16 %v901
        %v1087 = vunpack.c.h.b16 %v901
        %v1088 = vunpack.c.l.b16 %v902
        %v1089 = vunpack.c.h.b16 %v902
        %v1090 = vunpack.c.l.b16 %v903
        %v1091 = vunpack.c.h.b16 %v903
        %v1092 = vunpack.c.l.b16 %v904
        %v1093 = vunpack.c.h.b16 %v904
        %v1094 = vunpack.c.l.b16 %v905
        %v1095 = vunpack.c.h.b16 %v905
        %v1096 = vunpack.c.l.b16 %v906
        %v1097 = vunpack.c.h.b16 %v906
        %v1098 = vunpack.c.l.b16 %v907
        %v1099 = vunpack.c.h.b16 %v907
        %v1100 = vunpack.c.l.b16 %v908
        %v1101 = vunpack.c.h.b16 %v908
        %v1102 = vunpack.c.l.b16 %v909
        %v1103 = vunpack.c.h.b16 %v909
        %v1104 = vunpack.c.l.b16 %v910
        %v1105 = vunpack.c.h.b16 %v910
        %v1106 = vunpack.c.l.b16 %v911
        %v1107 = vunpack.c.h.b16 %v911
        %v1108 = vunpack.c.l.b16 %v912
        %v1109 = vunpack.c.h.b16 %v912
        %v1110 = vunpack.c.l.b16 %v913
        %v1111 = vunpack.c.h.b16 %v913
        %v1112 = vunpack.c.l.b16 %v914
        %v1113 = vunpack.c.h.b16 %v914
        %v1114 = vunpack.c.l.b16 %v915
        %v1115 = vunpack.c.h.b16 %v915
        %v1116 = vunpack.c.l.b16 %v916
        %v1117 = vunpack.c.h.b16 %v916
        %v1118 = vunpack.c.l.b16 %v917
        %v1119 = vunpack.c.h.b16 %v917
        %v1120 = vunpack.c.l.b16 %v918
        %v1121 = vunpack.c.h.b16 %v918
        %v1122 = vunpack.c.l.b16 %v919
        %v1123 = vunpack.c.h.b16 %v919
        %v1124 = vunpack.c.l.b16 %v920
        %v1125 = vunpack.c.h.b16 %v920
        %v1126 = vunpack.c.l.b16 %v921
        %v1127 = vunpack.c.h.b16 %v921
        %v1128 = vunpack.c.l.b16 %v922
        %v1129 = vunpack.c.h.b16 %v922
        %v1130 = vunpack.c.l.b16 %v923
        %v1131 = vunpack.c.h.b16 %v923
        %v1132 = vunpack.c.l.b16 %v924
        %v1133 = vunpack.c.h.b16 %v924
        %v1134 = vunpack.c.l.b16 %v925
        %v1135 = vunpack.c.h.b16 %v925
        %v1136 = vunpack.c.l.b16 %v926
        %v1137 = vunpack.c.h.b16 %v926
        %v1138 = vunpack.c.l.b16 %v927
        %v1139 = vunpack.c.h.b16 %v927
        %v1140 = vunpack.c.l.b16 %v928
        %v1141 = vunpack.c.h.b16 %v928
        %v1142 = vunpack.c.l.b16 %v929
        %v1143 = vunpack.c.h.b16 %v929
        %v1144 = vunpack.c.l.b16 %v930
        %v1145 = vunpack.c.h.b16 %v930
        %v1146 = vunpack.c.l.b16 %v931
        %v1147 = vunpack.c.h.b16 %v931
        %v1148 = vunpack.c.l.b16 %v932
        %v1149 = vunpack.c.h.b16 %v932
        %v1150 = vunpack.c.l.b16 %v933
        %v1151 = vunpack.c.h.b16 %v933
        %v1152 = vunpack.c.l.b16 %v934
        %v1153 = vunpack.c.h.b16 %v934
        %v1154 = vunpack.c.l.b16 %v935
        %v1155 = vunpack.c.h.b16 %v935
        %v1156 = vpack.c.b16 %v1030, %v1028
        %v1157 = vpack.c.b16 %v1031, %v1029
        %v1158 = vpack.c.b16 %v1034, %v1032
        %v1159 = vpack.c.b16 %v1035, %v1033
        %v1160 = vpack.c.b16 %v1038, %v1036
        %v1161 = vpack.c.b16 %v1039, %v1037
        %v1162 = vpack.c.b16 %v1042, %v1040
        %v1163 = vpack.c.b16 %v1043, %v1041
        %v1164 = vpack.c.b16 %v1046, %v1044
        %v1165 = vpack.c.b16 %v1047, %v1045
        %v1166 = vpack.c.b16 %v1050, %v1048
        %v1167 = vpack.c.b16 %v1051, %v1049
        %v1168 = vpack.c.b16 %v1054, %v1052
        %v1169 = vpack.c.b16 %v1055, %v1053
        %v1170 = vpack.c.b16 %v1058, %v1056
        %v1171 = vpack.c.b16 %v1059, %v1057
        %v1172 = vpack.c.b16 %v1062, %v1060
        %v1173 = vpack.c.b16 %v1063, %v1061
        %v1174 = vpack.c.b16 %v1066, %v1064
        %v1175 = vpack.c.b16 %v1067, %v1065
        %v1176 = vpack.c.b16 %v1070, %v1068
        %v1177 = vpack.c.b16 %v1071, %v1069
        %v1178 = vpack.c.b16 %v1074, %v1072
        %v1179 = vpack.c.b16 %v1075, %v1073
        %v1180 = vpack.c.b16 %v1078, %v1076
        %v1181 = vpack.c.b16 %v1079, %v1077
        %v1182 = vpack.c.b16 %v1082, %v1080
        %v1183 = vpack.c.b16 %v1083, %v1081
        %v1184 = vpack.c.b16 %v1086, %v1084
        %v1185 = vpack.c.b16 %v1087, %v1085
        %v1186 = vpack.c.b16 %v1090, %v1088
        %v1187 = vpack.c.b16 %v1091, %v1089
        %v1188 = vpack.c.b16 %v1094, %v1092
        %v1189 = vpack.c.b16 %v1095, %v1093
        %v1190 = vpack.c.b16 %v1098, %v1096
        %v1191 = vpack.c.b16 %v1099, %v1097
        %v1192 = vpack.c.b16 %v1102, %v1100
        %v1193 = vpack.c.b16 %v1103, %v1101
        %v1194 = vpack.c.b16 %v1106, %v1104
        %v1195 = vpack.c.b16 %v1107, %v1105
        %v1196 = vpack.c.b16 %v1110, %v1108
        %v1197 = vpack.c.b16 %v1111, %v1109
        %v1198 = vpack.c.b16 %v1114, %v1112
        %v1199 = vpack.c.b16 %v1115, %v1113
        %v1200 = vpack.c.b16 %v1118, %v1116
        %v1201 = vpack.c.b16 %v1119, %v1117
        %v1202 = vpack.c.b16 %v1122, %v1120
        %v1203 = vpack.c.b16 %v1123, %v1121
        %v1204 = vpack.c.b16 %v1126, %v1124
        %v1205 = vpack.c.b16 %v1127, %v1125
        %v1206 = vpack.c.b16 %v1130, %v1128
        %v1207 = vpack.c.b16 %v1131, %v1129
        %v1208 = vpack.c.b16 %v1134, %v1132
        %v1209 = vpack.c.b16 %v1135, %v1133
        %v1210 = vpack.c.b16 %v1138, %v1136
        %v1211 = vpack.c.b16 %v1139, %v1137
        %v1212 = vpack.c.b16 %v1142, %v1140
        %v1213 = vpack.c.b16 %v1143, %v1141
        %v1214 = vpack.c.b16 %v1146, %v1144
        %v1215 = vpack.c.b16 %v1147, %v1145
        %v1216 = vpack.c.b16 %v1150, %v1148
        %v1217 = vpack.c.b16 %v1151, %v1149
        %v1218 = vpack.c.b16 %v1154, %v1152
        %v1219 = vpack.c.b16 %v1155, %v1153
        %1284 = vmatprep.subr.bf16.mxu0 %v1157
        %1285 = vmatpush1.bf16.msra.mxu0 %v1156
        %1286 = vmatprep.subr.bf16.mxu0 %v1159
        %1287 = vmatpush1.bf16.msra.mxu0 %v1158
        %1288 = vmatprep.subr.bf16.mxu0 %v1161
        %1289 = vmatpush1.bf16.msra.mxu0 %v1160
        %1290 = vmatprep.subr.bf16.mxu0 %v1163
        %1291 = vmatpush1.bf16.msra.mxu0 %v1162
        %1292 = vmatprep.subr.bf16.mxu0 %v1165
        %1293 = vmatpush1.bf16.msra.mxu0 %v1164
        %1294 = vmatprep.subr.bf16.mxu0 %v1167
        %1295 = vmatpush1.bf16.msra.mxu0 %v1166
        %1296 = vmatprep.subr.bf16.mxu0 %v1169
        %1297 = vmatpush1.bf16.msra.mxu0 %v1168
        %1298 = vmatprep.subr.bf16.mxu0 %v1171
        %1299 = vmatpush1.bf16.msra.mxu0 %v1170
        %1300 = vmatprep.subr.bf16.mxu0 %v1173
        %1301 = vmatpush1.bf16.msra.mxu0 %v1172
        %1302 = vmatprep.subr.bf16.mxu0 %v1175
        %1303 = vmatpush1.bf16.msra.mxu0 %v1174
        %1304 = vmatprep.subr.bf16.mxu0 %v1177
        %1305 = vmatpush1.bf16.msra.mxu0 %v1176
        %1306 = vmatprep.subr.bf16.mxu0 %v1179
        %1307 = vmatpush1.bf16.msra.mxu0 %v1178
        %1308 = vmatprep.subr.bf16.mxu0 %v1181
        %1309 = vmatpush1.bf16.msra.mxu0 %v1180
        %1310 = vmatprep.subr.bf16.mxu0 %v1183
        %1311 = vmatpush1.bf16.msra.mxu0 %v1182
        %1312 = vmatprep.subr.bf16.mxu0 %v1185
        %1313 = vmatpush1.bf16.msra.mxu0 %v1184
        %1314 = vmatprep.subr.bf16.mxu0 %v1187
        %1315 = vmatpush1.bf16.msra.mxu0 %v1186
        %1316 = vmatprep.mubr.bf16.mxu0 %v957
        %1317 = vmatmul.mubr.bf16.gmra.mrb[0].mxu0 %v956
        %v1318 = vpop.f32.mrb[0].mxu0
        %v1319 = vadd.f32 0.0, %v1318
        %v1320 = vpop.f32.mrb[0].mxu0
        %v1321 = vadd.f32 0.0, %v1320
        %v1322 = vpop.f32.mrb[0].mxu0
        %v1323 = vadd.f32 0.0, %v1322
        %v1324 = vpop.f32.mrb[0].mxu0
        %v1325 = vadd.f32 0.0, %v1324
        %1326 = vdwg.mxu0
        %1327 = vmatprep.subr.bf16.mxu0 %v1189
        %1328 = vmatpush1.bf16.msra.mxu0 %v1188
        %1329 = vmatprep.subr.bf16.mxu0 %v1191
        %1330 = vmatpush1.bf16.msra.mxu0 %v1190
        %1331 = vmatprep.subr.bf16.mxu0 %v1193
        %1332 = vmatpush1.bf16.msra.mxu0 %v1192
        %1333 = vmatprep.subr.bf16.mxu0 %v1195
        %1334 = vmatpush1.bf16.msra.mxu0 %v1194
        %1335 = vmatprep.subr.bf16.mxu0 %v1197
        %1336 = vmatpush1.bf16.msra.mxu0 %v1196
        %1337 = vmatprep.subr.bf16.mxu0 %v1199
        %1338 = vmatpush1.bf16.msra.mxu0 %v1198
        %1339 = vmatprep.subr.bf16.mxu0 %v1201
        %1340 = vmatpush1.bf16.msra.mxu0 %v1200
        %1341 = vmatprep.subr.bf16.mxu0 %v1203
        %1342 = vmatpush1.bf16.msra.mxu0 %v1202
        %1343 = vmatprep.subr.bf16.mxu0 %v1205
        %1344 = vmatpush1.bf16.msra.mxu0 %v1204
        %1345 = vmatprep.subr.bf16.mxu0 %v1207
        %1346 = vmatpush1.bf16.msra.mxu0 %v1206
        %1347 = vmatprep.subr.bf16.mxu0 %v1209
        %1348 = vmatpush1.bf16.msra.mxu0 %v1208
        %1349 = vmatprep.subr.bf16.mxu0 %v1211
        %1350 = vmatpush1.bf16.msra.mxu0 %v1210
        %1351 = vmatprep.subr.bf16.mxu0 %v1213
        %1352 = vmatpush1.bf16.msra.mxu0 %v1212
        %1353 = vmatprep.subr.bf16.mxu0 %v1215
        %1354 = vmatpush1.bf16.msra.mxu0 %v1214
        %1355 = vmatprep.subr.bf16.mxu0 %v1217
        %1356 = vmatpush1.bf16.msra.mxu0 %v1216
        %1357 = vmatprep.subr.bf16.mxu0 %v1219
        %1358 = vmatpush1.bf16.msra.mxu0 %v1218
        %1359 = vmatprep.mubr.bf16.mxu0 %v959
        %1360 = vmatmul.mubr.bf16.gmra.mrb[0].mxu0 %v958
        %v1361 = vpop.f32.mrb[0].mxu0
        %v1362 = vadd.f32 %v1319, %v1361
        %v1363 = vpop.f32.mrb[0].mxu0
        %v1364 = vadd.f32 %v1321, %v1363
        %v1365 = vpop.f32.mrb[0].mxu0
        %v1366 = vadd.f32 %v1323, %v1365
        %v1367 = vpop.f32.mrb[0].mxu0
        %v1368 = vadd.f32 %v1325, %v1367
        %1369 = vdwg.mxu0
        %v1370 = vadd.f32 %v936, %v1362
        %v1371 = vadd.f32 %v937, %v1364
        %v1372 = vadd.f32 %v938, %v1366
        %v1373 = vadd.f32 %v939, %v1368
        %1374 = vst [vmem:[#allocation2] sm:$0xff] %v1370
        %1375 = vst [vmem:[#allocation2 + $0x8] sm:$0xff] %v1371
        %1376 = vst [vmem:[#allocation2 + $0x10] sm:$0xff] %v1372
        %1377 = vst [vmem:[#allocation2 + $0x18] sm:$0xff] %v1373
        // Predicated region
        $region45: #{binary_diff_forward.1} parent=31 // pred_check
          %p1378 = pneg %p305
        $region46: #{binary_diff_forward.1} parent=31 // pred_check_branch
          %1380 = sbr.rel (%p1378) target = $region48
        $region47: #{binary_diff_forward.1} parent=31 // pred_region
          %v1381 = vld [vmem:[#allocation2] sm:$0xff]
          %v1382 = vld [vmem:[#allocation2 + $0x8] sm:$0xff]
          %v1383 = vld [vmem:[#allocation2 + $0x10] sm:$0xff]
          %v1384 = vld [vmem:[#allocation2 + $0x18] sm:$0xff]
          %1385 = vst [vmem:[%s286] sm:$0xff] %v1381
          %1386 = vst [vmem:[%s286 + $0x8] sm:$0xff] %v1382
          %1387 = vst [vmem:[%s286 + $0x10] sm:$0xff] %v1383
          %1388 = vst [vmem:[%s286 + $0x18] sm:$0xff] %v1384
        $region48: #{binary_diff_forward.1} parent=31 // pred_fallthru
          _
        %s1389 = sand.u32 %s135, 1
        %s1390 = sand.u32 %s135, 1
        %s1391 = smul.addr %s1390, 32
        %s1392 = scalar_lea.vmem [#allocation9], %s1391
        // Predicated region
        $region49: #{binary_diff_forward.1} parent=31 // pred_check
          %p1393 = pneg %p145
        $region50: #{binary_diff_forward.1} parent=31 // pred_check_branch
          %1395 = sbr.rel (%p1393) target = $region52
        $region51: #{binary_diff_forward.1} parent=31 // pred_region
          %s1396 = smul.u32 2, %s27
          %s1397 = smul.u32 2, %s28
          %s1398 = smul.addr %s1396, 4
          %s1399 = sadd.s32 %s1397, %s1398
          %s1400 = smul.addr %s1399, 8
          %s1401 = scalar_lea.vmem %s4, %s1400
          // Predicated region
          $region53: #{binary_diff_forward.1} parent=51 // pred_check
            _
          $region54: #{binary_diff_forward.1} parent=51 // pred_check_branch
            %1403 = sbr.rel (0) target = $region56
          $region55: #{binary_diff_forward.1} parent=51 // pred_region
            // Predicated region
            $region57: #{binary_diff_forward.1} parent=55 // pred_check
              _
            $region58: #{binary_diff_forward.1} parent=55 // pred_check_branch
              %1405 = sbr.rel (0) target = $region60
            $region59: #{binary_diff_forward.1} parent=55 // pred_region
              loop: start=0, step=1, limit=1
              $region61: #{binary_diff_forward.1} parent=59 // loop_pre_header
                _
              $region62: #{binary_diff_forward.1} parent=59 // loop_header
                %s1407 = sphi 0, %s1411
                %p1408 = scmp.ge.s32.totalorder %s1407, 1
                %s1412 = sphi %s1392, %s1392
                %s1413 = sphi %s1401, %s1401
              $region63: #{binary_diff_forward.1} parent=59 // loop_header_branch
                %1410 = sbr.rel (%p1408) target = $region67
              $region64: #{binary_diff_forward.1} parent=59 // loop_body
                %v1414 = vld [vmem:[%s1412] sm:$0xff]
                %1415 = vst [vmem:[%s1413] sm:$0xff] %v1414
                %v1416 = vld [vmem:[%s1412 + $0x8] sm:$0xff]
                %1417 = vst [vmem:[%s1413 + $0x8] sm:$0xff] %v1416
                %v1418 = vld [vmem:[%s1412 + $0x10] sm:$0xff]
                %1419 = vst [vmem:[%s1413 + $0x20] sm:$0xff] %v1418
                %v1420 = vld [vmem:[%s1412 + $0x18] sm:$0xff]
                %1421 = vst [vmem:[%s1413 + $0x28] sm:$0xff] %v1420
              $region65: #{binary_diff_forward.1} parent=59 // loop_footer
                %s1411 = sadd.s32 1, %s1407
              $region66: #{binary_diff_forward.1} parent=59 // loop_footer_branch
                %1406 = sbr.rel target = $region62
              $region67: #{binary_diff_forward.1} parent=59 // loop_exit
                _
            $region60: #{binary_diff_forward.1} parent=55 // pred_fallthru
              _
            // Predicated region
            $region68: #{binary_diff_forward.1} parent=55 // pred_check
              _
            $region69: #{binary_diff_forward.1} parent=55 // pred_check_branch
              %1423 = sbr.rel target = $region71
            $region70: #{binary_diff_forward.1} parent=55 // pred_region
              _
            $region71: #{binary_diff_forward.1} parent=55 // pred_fallthru
              _
          $region56: #{binary_diff_forward.1} parent=51 // pred_fallthru
            _
          %1424 = vnop
        $region52: #{binary_diff_forward.1} parent=31 // pred_fallthru
          _
      $region32: #{binary_diff_forward.1} parent=5 // pred_fallthru
        _
      %p1425 = scmp.le.s32.totalorder 2, %s17
      // Predicated region
      $region72: #{binary_diff_forward.1} parent=5 // pred_check
        %p1426 = pneg %p1425
      $region73: #{binary_diff_forward.1} parent=5 // pred_check_branch
        %1428 = sbr.rel (%p1426) target = $region75
      $region74: #{binary_diff_forward.1} parent=5 // pred_region
        %s1429 = ssub.s32 %s17, 2
        // Predicated region
        $region76: #{binary_diff_forward.1} parent=74 // pred_check
          %p1430 = pneg %p151
        $region77: #{binary_diff_forward.1} parent=74 // pred_check_branch
          %1432 = sbr.rel (%p1430) target = $region79
        $region78: #{binary_diff_forward.1} parent=74 // pred_region
          %s1433 = sand.u32 %s136, 1
          %s1434 = sand.u32 %s136, 1
          %s1435 = smul.addr %s1434, 32
          %s1436 = scalar_lea.vmem [#allocation9], %s1435
        $region79: #{binary_diff_forward.1} parent=74 // pred_fallthru
          _
      $region75: #{binary_diff_forward.1} parent=5 // pred_fallthru
        _
    $region6: #{binary_diff_forward.1} parent=1 // loop_footer
      %s21 = sadd.s32 1, %s17
    $region7: #{binary_diff_forward.1} parent=1 // loop_footer_branch
      %16 = sbr.rel target = $region3
    $region8: #{binary_diff_forward.1} parent=1 // loop_exit
      _
    %1437 = vsyncpa [#allocation6], 1
    %s1438 = scalar_lea.sflag [#allocation6], 1
    %1439 = vsyncpa %s1438, 1
    %1440 = vsyncpa [#allocation8], 1
    %s1441 = scalar_lea.sflag [#allocation8], 1
    %1442 = vsyncpa %s1441, 1

</llo_original>
